<compile_context>
chip_gen: v6e
topology: v6e:2x2x1
jax: 0.10.0
libtpu: 0.0.40
codegen_flags: <defaults>
</compile_context>

<pallas_src>
import functools
import math

import jax
import jax.numpy as jnp
from jax.experimental import pallas as pl
from jax.experimental.pallas import tpu as pltpu


def _round_up(x: int, m: int) -> int:
    return ((x + m - 1) // m) * m


def _pick_tile(dim: int, cap: int, gran: int) -> int:
    """Largest multiple of `gran` that divides `dim` and is <= cap."""
    cap = max(gran, min(cap, dim))
    cap = (cap // gran) * gran
    for t in range(cap, gran - 1, -gran):
        if dim % t == 0:
            return t
    return gran


def _hw_config():
    """Per-TPU-generation tile caps and VMEM ceiling."""
    try:
        kind = jax.devices()[0].device_kind.lower()
    except Exception:  # pragma: no cover - defensive
        kind = ""
    if "7" in kind:
        # v7x: 64 MiB VMEM / TensorCore -> keep double-buffered footprint small.
        return dict(tm_cap=512, tn_cap=512, tk_cap=512, vmem_ceiling=40 << 20)
    # v5e / v6e: 128 MiB VMEM -> bigger output tiles amortize W re-streaming.
    return dict(tm_cap=512, tn_cap=1024, tk_cap=512, vmem_ceiling=100 << 20)


def _make_kernel(has_bias: bool, use_scratch: bool):
    """Build the matmul(+bias) kernel body.

    use_scratch=True  : non-f32 output -> f32 VMEM accumulator, cast at end.
    use_scratch=False : f32 output -> accumulate straight into o_ref.
    """
    def kernel(*refs):
        if use_scratch:
            if has_bias:
                x_ref, wt_ref, b_ref, o_ref, acc_ref = refs
            else:
                x_ref, wt_ref, o_ref, acc_ref = refs

            @pl.when(pl.program_id(2) == 0)
            def _():
                acc_ref[...] = jnp.zeros_like(acc_ref)

            acc_ref[...] += jnp.dot(
                x_ref[...], wt_ref[...], preferred_element_type=jnp.float32)

            @pl.when(pl.program_id(2) == pl.num_programs(2) - 1)
            def _():
                r = acc_ref[...]
                if has_bias:
                    r = r + b_ref[...]
                o_ref[...] = r.astype(o_ref.dtype)
        else:
            if has_bias:
                x_ref, wt_ref, b_ref, o_ref = refs
            else:
                x_ref, wt_ref, o_ref = refs

            @pl.when(pl.program_id(2) == 0)
            def _():
                o_ref[...] = jnp.zeros_like(o_ref)

            o_ref[...] += jnp.dot(
                x_ref[...], wt_ref[...], preferred_element_type=jnp.float32)

            if has_bias:
                @pl.when(pl.program_id(2) == pl.num_programs(2) - 1)
                def _():
                    o_ref[...] += b_ref[...]

    return kernel


def _linear_impl(x: jax.Array, weight: jax.Array, bias=None) -> jax.Array:
    """y = x @ weight.T + bias  (PyTorch Linearlayer.forward semantics)."""
    *lead, K = x.shape
    N, K_w = weight.shape
    assert K == K_w, "in_features mismatch"

    M = 1
    for d in lead:
        M *= d

    out_dtype = x.dtype
    has_bias = bias is not None
    use_scratch = jnp.dtype(out_dtype) != jnp.dtype(jnp.float32)

    cfg = _hw_config()

    # Pad only to hardware granularity (8 sublanes / 128 lanes), K zero-padded
    # so padded MACs contribute 0.  Padding is skipped when already aligned.
    Mp = _round_up(M, 8)
    Kp = _round_up(K, 128)
    Np = _round_up(N, 128)

    tm = _pick_tile(Mp, cfg["tm_cap"], 8)
    tk = _pick_tile(Kp, cfg["tk_cap"], 128)
    tn = _pick_tile(Np, cfg["tn_cap"], 128)

    x2 = x.reshape(M, K)
    if (Mp, Kp) != (M, K):
        x2 = jnp.pad(x2, ((0, Mp - M), (0, Kp - K)))

    # Lane-dense (K, N) weight layout for the MXU RHS.  Under jit the
    # transpose + pad fuse into one copy; for a static layer this should be
    # precomputed once and cached by the caller.
    wt = weight.T
    if (Kp, Np) != (K, N):
        wt = jnp.pad(wt, ((0, Kp - K), (0, Np - N)))

    operands = [x2, wt]

    grid_m, grid_n, grid_k = Mp // tm, Np // tn, Kp // tk

    # Lead with whichever parallel axis has more tiles (v7x megacore split);
    # reduction axis (K) stays last / "arbitrary".
    if grid_m >= grid_n:
        grid = (grid_m, grid_n, grid_k)
        x_map = lambda i, j, k: (i, k)
        w_map = lambda i, j, k: (k, j)
        b_map = lambda i, j, k: (0, j)
        o_map = lambda i, j, k: (i, j)
    else:
        grid = (grid_n, grid_m, grid_k)
        x_map = lambda j, i, k: (i, k)
        w_map = lambda j, i, k: (k, j)
        b_map = lambda j, i, k: (0, j)
        o_map = lambda j, i, k: (i, j)

    in_specs = [
        pl.BlockSpec((tm, tk), x_map),
        pl.BlockSpec((tk, tn), w_map),
    ]
    if has_bias:
        b = bias.astype(jnp.float32).reshape(1, N)
        if Np != N:
            b = jnp.pad(b, ((0, 0), (0, Np - N)))
        operands.append(b)
        in_specs.append(pl.BlockSpec((1, tn), b_map))

    scratch_shapes = []
    if use_scratch:
        scratch_shapes.append(pltpu.VMEM((tm, tn), jnp.float32))

    # VMEM limit from the actual double-buffered block footprint (+ headroom),
    # capped below the per-generation physical VMEM.
    itx = jnp.dtype(x.dtype).itemsize
    itw = jnp.dtype(weight.dtype).itemsize
    ito = jnp.dtype(out_dtype).itemsize
    block_bytes = 2 * (tm * tk * itx + tk * tn * itw) + 2 * tm * tn * ito
    if has_bias:
        block_bytes += 2 * tn * 4
    if use_scratch:
        block_bytes += tm * tn * 4
    vmem_limit = int(block_bytes * 1.3) + (2 << 20)
    vmem_limit = min(max(vmem_limit, 16 << 20), cfg["vmem_ceiling"])

    grid_spec = pltpu.PrefetchScalarGridSpec(
        num_scalar_prefetch=0,
        grid=grid,
        in_specs=in_specs,
        out_specs=pl.BlockSpec((tm, tn), o_map),
        scratch_shapes=scratch_shapes,
    )

    out_p = pl.pallas_call(
        _make_kernel(has_bias, use_scratch),
        out_shape=jax.ShapeDtypeStruct((Mp, Np), out_dtype),
        grid_spec=grid_spec,
        compiler_params=pltpu.CompilerParams(
            dimension_semantics=("parallel", "parallel", "arbitrary"),
            vmem_limit_bytes=vmem_limit,
        ),
    )(*operands)

    out = out_p if (Mp, Np) == (M, N) else out_p[:M, :N]
    return out.reshape(*lead, N)


# jit the whole wrapper so pad / transpose / final slice fuse with XLA copies.
linear = jax.jit(_linear_impl)


if __name__ == "__main__":
    key = jax.random.PRNGKey(0)
    kx2, kx3, kw, kb = jax.random.split(key, 4)

    in_features, out_features = 32, 64
    batch, seq = 2, 8

    # Xavier-uniform weight (as in reset_params); nonzero bias to exercise
    # the bias path (module inits bias to 0, but that would hide bugs).
    limit = math.sqrt(6.0 / (in_features + out_features))
    weight = jax.random.uniform(
        kw, (out_features, in_features), jnp.float32, -limit, limit
    )
    bias = 0.1 * jax.random.normal(kb, (out_features,), dtype=jnp.float32)

    # 2D path (torch.addmm branch): x is (batch, in_features)
    x2 = jax.random.normal(kx2, (batch, in_features), dtype=jnp.float32)
    y2 = jax.block_until_ready(linear(x2, weight, bias))
    ref2 = x2 @ weight.T + bias
    assert y2.shape == (batch, out_features)
    assert jnp.allclose(y2, ref2, atol=1e-5, rtol=1e-5), "2D linear mismatch"

    # N-D path (matmul + bias branch): x is (batch, seq, in_features)
    x3 = jax.random.normal(kx3, (batch, seq, in_features), dtype=jnp.float32)
    y3 = jax.block_until_ready(linear(x3, weight, bias))
    ref3 = x3 @ weight.T + bias
    assert y3.shape == (batch, seq, out_features)
    assert jnp.allclose(y3, ref3, atol=1e-5, rtol=1e-5), "3D linear mismatch"

    # No-bias path (bias-free kernel variant)
    y_nb = jax.block_until_ready(linear(x2, weight, None))
    assert jnp.allclose(y_nb, x2 @ weight.T, atol=1e-5, rtol=1e-5), \
        "no-bias linear mismatch"

    # bf16 path (f32-accumulator scratch + final cast variant)
    xb = x3.astype(jnp.bfloat16)
    wb = weight.astype(jnp.bfloat16)
    yb = jax.block_until_ready(linear(xb, wb, bias))
    refb = (xb.astype(jnp.float32) @ wb.astype(jnp.float32).T + bias)
    assert yb.dtype == jnp.bfloat16
    assert jnp.allclose(yb.astype(jnp.float32), refb, atol=2e-2, rtol=2e-2), \
        "bf16 linear mismatch"

    # TODO(synk): profileModule is host-side metadata (param/MAC counting), not a kernel.
    print("KERNEL_OK")
</pallas_src>

<mosaic_0001>
module attributes {stable_mosaic.version = 11 : i64} {
  func.func @kernel(%arg0: i32, %arg1: i32, %arg2: i32, %arg3: memref<8x128xf32, #tpu.memory_space<vmem>>, %arg4: memref<128x128xf32, #tpu.memory_space<vmem>>, %arg5: memref<1x128xf32, #tpu.memory_space<vmem>>, %arg6: memref<8x128xf32, #tpu.memory_space<vmem>>) attributes {dimension_semantics = [#tpu.dimension_semantics<parallel>, #tpu.dimension_semantics<parallel>, #tpu.dimension_semantics<arbitrary>], iteration_bounds = array<i64: 1, 1, 1>, scalar_prefetch = 0 : i64, scratch_operands = 0 : i64, tpu.core_type = #tpu.core_type<tc>, window_params = [{transform_indices = @transform_0, window_bounds = array<i64: 8, 128>}, {transform_indices = @transform_1, window_bounds = array<i64: 128, 128>}, {transform_indices = @transform_2, window_bounds = array<i64: 1, 128>}, {transform_indices = @transform_3, window_bounds = array<i64: 8, 128>}]} {
    %c0_i32 = arith.constant 0 : i32
    %0 = arith.cmpi eq, %arg2, %c0_i32 : i32
    %1 = arith.extui %0 : i1 to i32
    %c0_i32_0 = arith.constant 0 : i32
    %2 = arith.cmpi ne, %1, %c0_i32_0 : i32
    scf.if %2 {
      %cst_10 = arith.constant 0.000000e+00 : f32
      %12 = vector.broadcast %cst_10 : f32 to vector<8x128xf32>
      %c0_11 = arith.constant 0 : index
      %c0_12 = arith.constant 0 : index
      %13 = vector.load %arg6[%c0_11, %c0_12] : memref<8x128xf32, #tpu.memory_space<vmem>>, vector<8x128xf32>
      tpu.vector_store %arg6[%c0_11, %c0_12], %12 {strides = array<i32>} : memref<8x128xf32, #tpu.memory_space<vmem>>, vector<8x128xf32>,
    } else {
    }
    %c0 = arith.constant 0 : index
    %c0_1 = arith.constant 0 : index
    %3 = vector.load %arg6[%c0, %c0_1] : memref<8x128xf32, #tpu.memory_space<vmem>>, vector<8x128xf32>
    %c0_2 = arith.constant 0 : index
    %c0_3 = arith.constant 0 : index
    %4 = vector.load %arg3[%c0_2, %c0_3] : memref<8x128xf32, #tpu.memory_space<vmem>>, vector<8x128xf32>
    %c0_4 = arith.constant 0 : index
    %c0_5 = arith.constant 0 : index
    %5 = vector.load %arg4[%c0_4, %c0_5] : memref<128x128xf32, #tpu.memory_space<vmem>>, vector<128x128xf32>
    %cst = arith.constant dense<0.000000e+00> : vector<8x128xf32>
    %6 = tpu.matmul %4, %5, %cst {dimension_numbers = #tpu.dot_dimension_numbers<[1], [0], [0], [1], [0, 0, 1, 1], [], []>} : vector<8x128xf32>, vector<128x128xf32>, vector<8x128xf32> -> vector<8x128xf32>
    %7 = arith.addf %3, %6 : vector<8x128xf32>
    %c0_6 = arith.constant 0 : index
    %c0_7 = arith.constant 0 : index
    %8 = vector.load %arg6[%c0_6, %c0_7] : memref<8x128xf32, #tpu.memory_space<vmem>>, vector<8x128xf32>
    tpu.vector_store %arg6[%c0_6, %c0_7], %7 {strides = array<i32>} : memref<8x128xf32, #tpu.memory_space<vmem>>, vector<8x128xf32>,
    %c0_i32_8 = arith.constant 0 : i32
    %9 = arith.cmpi eq, %arg2, %c0_i32_8 : i32
    %10 = arith.extui %9 : i1 to i32
    %c0_i32_9 = arith.constant 0 : i32
    %11 = arith.cmpi ne, %10, %c0_i32_9 : i32
    scf.if %11 {
      %c0_10 = arith.constant 0 : index
      %c0_11 = arith.constant 0 : index
      %12 = vector.load %arg6[%c0_10, %c0_11] : memref<8x128xf32, #tpu.memory_space<vmem>>, vector<8x128xf32>
      %c0_12 = arith.constant 0 : index
      %c0_13 = arith.constant 0 : index
      %13 = vector.load %arg5[%c0_12, %c0_13] : memref<1x128xf32, #tpu.memory_space<vmem>>, vector<1x128xf32>
      %14 = vector.broadcast %13 : vector<1x128xf32> to vector<8x128xf32>
      %15 = arith.addf %12, %14 : vector<8x128xf32>
      %c0_14 = arith.constant 0 : index
      %c0_15 = arith.constant 0 : index
      %16 = vector.load %arg6[%c0_14, %c0_15] : memref<8x128xf32, #tpu.memory_space<vmem>>, vector<8x128xf32>
      tpu.vector_store %arg6[%c0_14, %c0_15], %15 {strides = array<i32>} : memref<8x128xf32, #tpu.memory_space<vmem>>, vector<8x128xf32>,
    } else {
    }
    return
  }
  func.func @transform_0(%arg0: i32, %arg1: i32, %arg2: i32) -> (i32, i32) {
    %c0_i32 = arith.constant 0 : i32
    return %arg0, %arg2 : i32, i32
  }
  func.func @transform_1(%arg0: i32, %arg1: i32, %arg2: i32) -> (i32, i32) {
    %c0_i32 = arith.constant 0 : i32
    return %arg2, %arg1 : i32, i32
  }
  func.func @transform_2(%arg0: i32, %arg1: i32, %arg2: i32) -> (i32, i32) {
    %c0_i32 = arith.constant 0 : i32
    %c0_i32_0 = arith.constant 0 : i32
    return %c0_i32, %arg1 : i32, i32
  }
  func.func @transform_3(%arg0: i32, %arg1: i32, %arg2: i32) -> (i32, i32) {
    %c0_i32 = arith.constant 0 : i32
    return %arg0, %arg1 : i32, i32
  }
}

</mosaic_0001>

<llo_original>
// kernel: _linear_impl.1
$region0: #{_linear_impl.1}
  #allocation0 [shape = 'u32[]', space=smem, size = 0x4, offset = 0x4, fixed_abs, tag = 'smem constant byte address 0x4 - core index']
  #allocation1 [shape = 'u32[144,128]{1,0:T(1,128)}', space=vmem, size = 0x12000, scoped, tag = 'internal scratch']
  %s0 = inlined_call_operand.vmem [shape: f32[8,128], index: 0, kind: input, shape index: {}]
  %s1 = inlined_call_operand.vmem [shape: f32[128,128], index: 1, kind: input, shape index: {}]
  %s2 = inlined_call_operand.vmem [shape: f32[1,128], index: 2, kind: input, shape index: {}]
  %s3 = inlined_call_operand.vmem [shape: f32[8,128], index: 3, kind: output, shape index: {}]
  %s4 = sld [smem:[#allocation0]]
  $region30: #{_linear_impl.1} parent=0
    _
  %s6 = ssub.s32 1, %s4
  %s7 = scalar_select 0, %s6, %s4
  // Predicated region
  $region2: #{_linear_impl.1} parent=0 // pred_check
    _
  $region3: #{_linear_impl.1} parent=0 // pred_check_branch
    %9 = sbr.rel (0) target = $region5
  $region4: #{_linear_impl.1} parent=0 // pred_region
    _
  $region5: #{_linear_impl.1} parent=0 // pred_fallthru
    _
  // Predicated region
  $region6: #{_linear_impl.1} parent=0 // pred_check
    _
  $region7: #{_linear_impl.1} parent=0 // pred_check_branch
    %11 = sbr.rel (0) target = $region9
  $region8: #{_linear_impl.1} parent=0 // pred_region
    _
  $region9: #{_linear_impl.1} parent=0 // pred_fallthru
    _
  // Predicated region
  $region10: #{_linear_impl.1} parent=0 // pred_check
    _
  $region11: #{_linear_impl.1} parent=0 // pred_check_branch
    %13 = sbr.rel (0) target = $region13
  $region12: #{_linear_impl.1} parent=0 // pred_region
    _
  $region13: #{_linear_impl.1} parent=0 // pred_fallthru
    _
  %p14 = scmp.eq.s32.totalorder 0, 0
  // Predicated region
  $region14: #{_linear_impl.1} parent=0 // pred_check
    %p15 = pneg %p14
  $region15: #{_linear_impl.1} parent=0 // pred_check_branch
    %17 = sbr.rel (%p15) target = $region17
  $region16: #{_linear_impl.1} parent=0 // pred_region
    %18 = vst [vmem:[%s3] sm:$0xff] 0.0
  $region17: #{_linear_impl.1} parent=0 // pred_fallthru
    _
  %v19 = vld [vmem:[%s3] sm:$0xff]
  %v20 = vld [vmem:[%s0] sm:$0xff]
  %v21 = vld [vmem:[%s1] sm:$0xff]
  %v22 = vld [vmem:[%s1 + $0x8] sm:$0xff]
  %v23 = vld [vmem:[%s1 + $0x10] sm:$0xff]
  %v24 = vld [vmem:[%s1 + $0x18] sm:$0xff]
  %v25 = vld [vmem:[%s1 + $0x20] sm:$0xff]
  %v26 = vld [vmem:[%s1 + $0x28] sm:$0xff]
  %v27 = vld [vmem:[%s1 + $0x30] sm:$0xff]
  %v28 = vld [vmem:[%s1 + $0x38] sm:$0xff]
  %v29 = vld [vmem:[%s1 + $0x40] sm:$0xff]
  %v30 = vld [vmem:[%s1 + $0x48] sm:$0xff]
  %v31 = vld [vmem:[%s1 + $0x50] sm:$0xff]
  %v32 = vld [vmem:[%s1 + $0x58] sm:$0xff]
  %v33 = vld [vmem:[%s1 + $0x60] sm:$0xff]
  %v34 = vld [vmem:[%s1 + $0x68] sm:$0xff]
  %v35 = vld [vmem:[%s1 + $0x70] sm:$0xff]
  %v36 = vld [vmem:[%s1 + $0x78] sm:$0xff]
  %37 = vmatprep.subr.mxu0 0.0
  %38 = vmatpush1.msra.mxu0 %v36
  %39 = vmatprep.subr.mxu0 0.0
  %40 = vmatpush1.msra.mxu0 %v35
  %41 = vmatprep.subr.mxu0 0.0
  %42 = vmatpush1.msra.mxu0 %v34
  %43 = vmatprep.subr.mxu0 0.0
  %44 = vmatpush1.msra.mxu0 %v33
  %45 = vmatprep.subr.mxu0 0.0
  %46 = vmatpush1.msra.mxu0 %v32
  %47 = vmatprep.subr.mxu0 0.0
  %48 = vmatpush1.msra.mxu0 %v31
  %49 = vmatprep.subr.mxu0 0.0
  %50 = vmatpush1.msra.mxu0 %v30
  %51 = vmatprep.subr.mxu0 0.0
  %52 = vmatpush1.msra.mxu0 %v29
  %53 = vmatprep.subr.mxu0 0.0
  %54 = vmatpush1.msra.mxu0 %v28
  %55 = vmatprep.subr.mxu0 0.0
  %56 = vmatpush1.msra.mxu0 %v27
  %57 = vmatprep.subr.mxu0 0.0
  %58 = vmatpush1.msra.mxu0 %v26
  %59 = vmatprep.subr.mxu0 0.0
  %60 = vmatpush1.msra.mxu0 %v25
  %61 = vmatprep.subr.mxu0 0.0
  %62 = vmatpush1.msra.mxu0 %v24
  %63 = vmatprep.subr.mxu0 0.0
  %64 = vmatpush1.msra.mxu0 %v23
  %65 = vmatprep.subr.mxu0 0.0
  %66 = vmatpush1.msra.mxu0 %v22
  %67 = vmatprep.subr.mxu0 0.0
  %68 = vmatpush1.msra.mxu0 %v21
  %69 = vmatprep.subr.mxu0 0.0
  %70 = vmatpush2.msra.mxu0 0.0
  %71 = vmatprep.subr.mxu0 0.0
  %72 = vmatpush2.msra.mxu0 0.0
  %73 = vmatprep.subr.mxu0 0.0
  %74 = vmatpush2.msra.mxu0 0.0
  %75 = vmatprep.subr.mxu0 0.0
  %76 = vmatpush2.msra.mxu0 0.0
  %77 = vmatprep.subr.mxu0 0.0
  %78 = vmatpush2.msra.mxu0 0.0
  %79 = vmatprep.subr.mxu0 0.0
  %80 = vmatpush2.msra.mxu0 0.0
  %81 = vmatprep.subr.mxu0 0.0
  %82 = vmatpush2.msra.mxu0 0.0
  %83 = vmatprep.subr.mxu0 0.0
  %84 = vmatpush2.msra.mxu0 0.0
  %85 = vmatprep.subr.mxu0 0.0
  %86 = vmatpush2.msra.mxu0 0.0
  %87 = vmatprep.subr.mxu0 0.0
  %88 = vmatpush2.msra.mxu0 0.0
  %89 = vmatprep.subr.mxu0 0.0
  %90 = vmatpush2.msra.mxu0 0.0
  %91 = vmatprep.subr.mxu0 0.0
  %92 = vmatpush2.msra.mxu0 0.0
  %93 = vmatprep.subr.mxu0 0.0
  %94 = vmatpush2.msra.mxu0 0.0
  %95 = vmatprep.subr.mxu0 0.0
  %96 = vmatpush2.msra.mxu0 0.0
  %97 = vmatprep.subr.mxu0 0.0
  %98 = vmatpush2.msra.mxu0 0.0
  %99 = vmatprep.subr.mxu0 0.0
  %100 = vmatpush2.msra.mxu0 0.0
  %101 = vmatprep.mubr.f32.mxu0 0.0
  %102 = vmatmul.mubr.f32.gmra.mxu0 %v20
  %v103 = vpop.f32.mrf.mxu0
  %v104 = vadd.f32 0.0, %v103
  %v105 = vpop.f32.mrf.mxu0
  %106 = vdwg.mxu0
  %v107 = vadd.f32 %v19, %v104
  %108 = vst [vmem:[%s3] sm:$0xff] %v107
  // Predicated region
  $region18: #{_linear_impl.1} parent=0 // pred_check
    %p109 = pneg %p14
  $region19: #{_linear_impl.1} parent=0 // pred_check_branch
    %111 = sbr.rel (%p109) target = $region21
  $region20: #{_linear_impl.1} parent=0 // pred_region
    %v112 = vld [vmem:[%s3] sm:$0xff]
    %v113 = vld [vmem:[%s2] sm:$0x1]
    %v115 = vlaneseq
    %v116 = vshrl.u32 %v115, 7
    %v117 = vsub.s32 0, %v116
    %v118 = vrot.slane %v113, %v117
    %v120 = vadd.f32 %v112, %v118
    %121 = vst [vmem:[%s3] sm:$0xff] %v120
  $region21: #{_linear_impl.1} parent=0 // pred_fallthru
    _
  // Predicated region
  $region22: #{_linear_impl.1} parent=0 // pred_check
    _
  $region23: #{_linear_impl.1} parent=0 // pred_check_branch
    %123 = sbr.rel (0) target = $region25
  $region24: #{_linear_impl.1} parent=0 // pred_region
    _
  $region25: #{_linear_impl.1} parent=0 // pred_fallthru
    _
  // Predicated region
  $region26: #{_linear_impl.1} parent=0 // pred_check
    _
  $region27: #{_linear_impl.1} parent=0 // pred_check_branch
    %125 = sbr.rel (0) target = $region29
  $region28: #{_linear_impl.1} parent=0 // pred_region
    _
  $region29: #{_linear_impl.1} parent=0 // pred_fallthru
    _

</llo_original>
